<compile_context>
chip_gen: v6e
topology: v6e:2x2x1
jax: 0.10.0
libtpu: 0.0.40
codegen_flags: <defaults>
</compile_context>

<pallas_src>
import functools
import math

import jax
import jax.numpy as jnp
from jax.experimental import pallas as pl
from jax.experimental.pallas import tpu as pltpu


def _hinge_kernel(out_ref, tgt_ref, res_ref):
    o = out_ref[...]
    t = tgt_ref[...]
    # relu(1 - (2t - 1) * o); (t - 0.5)/0.5 == 2t - 1 exactly, so this matches
    # the PyTorch reference bit-for-bit.  Pure VPU mul/sub/max, no EUP.
    res_ref[...] = jnp.maximum(1.0 - (2.0 * t - 1.0) * o, 0.0)


def _round_up(x, m):
    return ((x + m - 1) // m) * m


def _vmem_capacity_bytes():
    # Trace-time hardware query; fall back to the smallest per-core VMEM in
    # the fleet (v7x: 64 MiB) if the query is unavailable.
    try:
        return int(pltpu.get_tpu_info().vmem_capacity_bytes)
    except Exception:  # pragma: no cover - defensive
        return 64 << 20


def _pick_block_bytes(vmem_cap):
    # 3 operands x 2 pipeline buffers should occupy ~35-40% of physical VMEM,
    # capped at 6 MiB/block (v6e is already ~86% of HBM roofline at 4 MiB and
    # on v7x >=4 MiB blocks keep the ~0.35 us/step overhead under ~7%).
    return int(min(6 << 20, max(1 << 20, (vmem_cap * 3 // 8) // 6)))


def _hinge_2d(o2d, t2d, *, block_bytes, vmem_cap):
    rows, lanes = o2d.shape
    elem_bytes = jnp.dtype(o2d.dtype).itemsize

    # Row tile: ~block_bytes per operand block, multiple of 8 sublanes.
    rows_per_block = max(8, (block_bytes // (lanes * elem_bytes)) // 8 * 8)

    slab_bytes = rows * lanes * elem_bytes
    if slab_bytes > (1 << 20):
        # Keep >= ~4 grid steps so (a) both v7x TensorCores get work via
        # dimension_semantics=("parallel",) and (b) the pipeline actually
        # overlaps DMA with compute instead of a bare prologue+epilogue.
        rows_per_block = min(rows_per_block, max(8, _round_up(pl.cdiv(rows, 4), 8)))

    tile = min(rows_per_block, rows)      # tile == rows (full extent) is legal
    grid = (pl.cdiv(rows, tile),)         # partial last block is masked by Pallas

    block_b = tile * lanes * elem_bytes
    # 3 operands x 2 buffers + headroom; leave ~25% of physical VMEM free for
    # the compiler instead of clamping at a fixed 32 MiB.
    vmem_limit = int(min((vmem_cap * 3) // 4,
                         max(16 << 20, 6 * block_b + (8 << 20))))

    n_elems = rows * lanes
    cost = pl.CostEstimate(
        flops=5 * n_elems,
        transcendentals=0,
        bytes_accessed=3 * n_elems * elem_bytes,
    )

    return pl.pallas_call(
        _hinge_kernel,
        out_shape=jax.ShapeDtypeStruct((rows, lanes), o2d.dtype),
        grid_spec=pltpu.PrefetchScalarGridSpec(
            num_scalar_prefetch=0,
            grid=grid,
            in_specs=[
                pl.BlockSpec((tile, lanes), lambda i: (i, 0)),
                pl.BlockSpec((tile, lanes), lambda i: (i, 0)),
            ],
            out_specs=pl.BlockSpec((tile, lanes), lambda i: (i, 0)),
        ),
        compiler_params=pltpu.CompilerParams(
            dimension_semantics=("parallel",),
            vmem_limit_bytes=vmem_limit,
        ),
        cost_estimate=cost,
    )(o2d, t2d)


@functools.partial(jax.jit, static_argnames=("block_bytes",))
def hinge_loss(output, target, *, block_bytes=None):
    assert output.shape == target.shape, "output/target must have equal shapes"
    orig_shape = output.shape
    dtype = output.dtype
    if target.dtype != dtype:
        target = target.astype(dtype)   # avoid in-kernel dtype promotion surprises

    n = math.prod(orig_shape) if orig_shape else 1

    vmem_cap = _vmem_capacity_bytes()
    if block_bytes is None:
        block_bytes = _pick_block_bytes(vmem_cap)

    # Wide, lane-dense last dim: largest of {4096,...,128} dividing n so the
    # common case needs no padding and every store is an unmasked full-width vst.
    lanes = 128
    for cand in (4096, 2048, 1024, 512, 256):
        if n % cand == 0:
            lanes = cand
            break

    rows = n // lanes
    n_main = rows * lanes
    tail = n - n_main                    # < 128 elems; only for awkward sizes

    o_flat = output.reshape(-1)
    t_flat = target.reshape(-1)

    pieces = []
    if rows > 0:
        if tail:
            o2d = o_flat[:n_main].reshape(rows, lanes)
            t2d = t_flat[:n_main].reshape(rows, lanes)
        else:
            o2d = o_flat.reshape(rows, lanes)
            t2d = t_flat.reshape(rows, lanes)
        main = _hinge_2d(o2d, t2d, block_bytes=block_bytes, vmem_cap=vmem_cap)
        pieces.append(main.reshape(-1))
    if tail:
        # TODO(synk): the <128-element non-lane-aligned remainder is computed
        # with plain jnp (negligible work); the lane-aligned bulk uses Pallas.
        o_t = o_flat[n_main:]
        t_t = t_flat[n_main:]
        pieces.append(jnp.maximum(1.0 - (2.0 * t_t - 1.0) * o_t, 0.0).astype(dtype))

    res_flat = pieces[0] if len(pieces) == 1 else jnp.concatenate(pieces)
    return res_flat.reshape(orig_shape)


if __name__ == "__main__":
    key = jax.random.PRNGKey(0)
    k1, k2, k3, k4 = jax.random.split(key, 4)

    # Small NCHW-like shape consistent with the forward (elementwise).
    shape = (2, 4, 16, 16)
    output = jax.random.normal(k1, shape, dtype=jnp.float32)
    target = jax.random.bernoulli(k2, 0.5, shape).astype(jnp.float32)  # {0,1} labels

    res = hinge_loss(output, target)
    jax.block_until_ready(res)

    ref = jnp.maximum(1.0 - ((target - 0.5) / 0.5) * output, 0.0)
    assert res.shape == shape
    assert jnp.allclose(res, ref, atol=1e-6), "mismatch vs reference"

    # Awkward (non-lane-aligned) shape to exercise the prefix + jnp-tail path.
    shape2 = (3, 5, 7, 11)
    output2 = jax.random.normal(k3, shape2, dtype=jnp.float32)
    target2 = jax.random.bernoulli(k4, 0.5, shape2).astype(jnp.float32)
    res2 = hinge_loss(output2, target2)
    jax.block_until_ready(res2)
    ref2 = jnp.maximum(1.0 - ((target2 - 0.5) / 0.5) * output2, 0.0)
    assert res2.shape == shape2
    assert jnp.allclose(res2, ref2, atol=1e-6), "mismatch vs reference (tail path)"

    print("KERNEL_OK")
</pallas_src>

<mosaic_0001>
module attributes {stable_mosaic.version = 11 : i64} {
  func.func @_hinge_kernel(%arg0: i32, %arg1: memref<1x2048xf32, #tpu.memory_space<vmem>>, %arg2: memref<1x2048xf32, #tpu.memory_space<vmem>>, %arg3: memref<1x2048xf32, #tpu.memory_space<vmem>>) attributes {dimension_semantics = [#tpu.dimension_semantics<parallel>], iteration_bounds = array<i64: 1>, scalar_prefetch = 0 : i64, scratch_operands = 0 : i64, tpu.core_type = #tpu.core_type<tc>, window_params = [{transform_indices = @transform_0, window_bounds = array<i64: 1, 2048>}, {transform_indices = @transform_1, window_bounds = array<i64: 1, 2048>}, {transform_indices = @transform_2, window_bounds = array<i64: 1, 2048>}]} {
    %c0 = arith.constant 0 : index
    %c0_0 = arith.constant 0 : index
    %0 = vector.load %arg1[%c0, %c0_0] : memref<1x2048xf32, #tpu.memory_space<vmem>>, vector<1x2048xf32>
    %c0_1 = arith.constant 0 : index
    %c0_2 = arith.constant 0 : index
    %1 = vector.load %arg2[%c0_1, %c0_2] : memref<1x2048xf32, #tpu.memory_space<vmem>>, vector<1x2048xf32>
    %cst = arith.constant 2.000000e+00 : f32
    %2 = vector.broadcast %cst : f32 to vector<1x2048xf32>
    %3 = arith.mulf %2, %1 : vector<1x2048xf32>
    %cst_3 = arith.constant 1.000000e+00 : f32
    %4 = vector.broadcast %cst_3 : f32 to vector<1x2048xf32>
    %5 = arith.subf %3, %4 : vector<1x2048xf32>
    %6 = arith.mulf %5, %0 : vector<1x2048xf32>
    %cst_4 = arith.constant 1.000000e+00 : f32
    %7 = vector.broadcast %cst_4 : f32 to vector<1x2048xf32>
    %8 = arith.subf %7, %6 : vector<1x2048xf32>
    %cst_5 = arith.constant 0.000000e+00 : f32
    %9 = vector.broadcast %cst_5 : f32 to vector<1x2048xf32>
    %10 = arith.maximumf %8, %9 : vector<1x2048xf32>
    %c0_6 = arith.constant 0 : index
    %c0_7 = arith.constant 0 : index
    %11 = vector.load %arg3[%c0_6, %c0_7] : memref<1x2048xf32, #tpu.memory_space<vmem>>, vector<1x2048xf32>
    tpu.vector_store %arg3[%c0_6, %c0_7], %10 {strides = array<i32>} : memref<1x2048xf32, #tpu.memory_space<vmem>>, vector<1x2048xf32>,
    return
  }
  func.func @transform_0(%arg0: i32) -> (i32, i32) {
    %c0_i32 = arith.constant 0 : i32
    %c0_i32_0 = arith.constant 0 : i32
    return %arg0, %c0_i32 : i32, i32
  }
  func.func @transform_1(%arg0: i32) -> (i32, i32) {
    %c0_i32 = arith.constant 0 : i32
    %c0_i32_0 = arith.constant 0 : i32
    return %arg0, %c0_i32 : i32, i32
  }
  func.func @transform_2(%arg0: i32) -> (i32, i32) {
    %c0_i32 = arith.constant 0 : i32
    %c0_i32_0 = arith.constant 0 : i32
    return %arg0, %c0_i32 : i32, i32
  }
}

</mosaic_0001>

<llo_original>
// kernel: hinge_loss.1
$region0: #{hinge_loss.1}
  #allocation0 [shape = 'u32[]', space=smem, size = 0x4, offset = 0x4, fixed_abs, tag = 'smem constant byte address 0x4 - core index']
  #allocation1 [shape = 'u32[144,128]{1,0:T(1,128)}', space=vmem, size = 0x12000, scoped, tag = 'internal scratch']
  %s0 = inlined_call_operand.vmem [shape: f32[1,2048], index: 0, kind: input, shape index: {}]
  %s1 = inlined_call_operand.vmem [shape: f32[1,2048], index: 1, kind: input, shape index: {}]
  %s2 = inlined_call_operand.vmem [shape: f32[1,2048], index: 2, kind: output, shape index: {}]
  %s3 = sld [smem:[#allocation0]]
  $region18: #{hinge_loss.1} parent=0
    _
  %s5 = ssub.s32 1, %s3
  %s6 = scalar_select 0, %s5, %s3
  // Predicated region
  $region2: #{hinge_loss.1} parent=0 // pred_check
    _
  $region3: #{hinge_loss.1} parent=0 // pred_check_branch
    %8 = sbr.rel (0) target = $region5
  $region4: #{hinge_loss.1} parent=0 // pred_region
    _
  $region5: #{hinge_loss.1} parent=0 // pred_fallthru
    _
  // Predicated region
  $region6: #{hinge_loss.1} parent=0 // pred_check
    _
  $region7: #{hinge_loss.1} parent=0 // pred_check_branch
    %10 = sbr.rel (0) target = $region9
  $region8: #{hinge_loss.1} parent=0 // pred_region
    _
  $region9: #{hinge_loss.1} parent=0 // pred_fallthru
    _
  %v11 = vld [vmem:[%s0] sm:$0xff]
  %v12 = vld [vmem:[%s0 + $0x8] sm:$0xff]
  %v13 = vld [vmem:[%s1] sm:$0xff]
  %v14 = vld [vmem:[%s1 + $0x8] sm:$0xff]
  %v15 = vmul.f32 %v13, 2.0
  %v16 = vmul.f32 %v14, 2.0
  %v17 = vsub.f32 %v15, 1.0
  %v18 = vsub.f32 %v16, 1.0
  %v19 = vmul.f32 %v17, %v11
  %v20 = vmul.f32 %v18, %v12
  %v21 = vsub.f32 1.0, %v19
  %v22 = vsub.f32 1.0, %v20
  %v23 = vmax.f32 %v21, 0.0
  %v24 = vmax.f32 %v22, 0.0
  %25 = vst [vmem:[%s2] sm:$0xff] %v23
  %26 = vst [vmem:[%s2 + $0x8] sm:$0xff] %v24
  // Predicated region
  $region10: #{hinge_loss.1} parent=0 // pred_check
    _
  $region11: #{hinge_loss.1} parent=0 // pred_check_branch
    %28 = sbr.rel (0) target = $region13
  $region12: #{hinge_loss.1} parent=0 // pred_region
    _
  $region13: #{hinge_loss.1} parent=0 // pred_fallthru
    _
  // Predicated region
  $region14: #{hinge_loss.1} parent=0 // pred_check
    _
  $region15: #{hinge_loss.1} parent=0 // pred_check_branch
    %30 = sbr.rel (0) target = $region17
  $region16: #{hinge_loss.1} parent=0 // pred_region
    _
  $region17: #{hinge_loss.1} parent=0 // pred_fallthru
    _

</llo_original>
